<compile_context>
chip_gen: v7x
topology: tpu7x:2x2x1
jax: 0.10.0
libtpu: 0.0.40
codegen_flags: <defaults>
</compile_context>

<pallas_src>
import functools

import jax
import jax.numpy as jnp
from jax import lax
from jax.experimental import pallas as pl
from jax.experimental.pallas import tpu as pltpu

# ---------------- model configuration (matches mlp_config) ----------------
D_USER = 32
D_ITEM = 32
INPUT_SIZE = D_USER + D_ITEM          # MLP input_size = 64
HIDDEN = (32, 32)                     # hidden_layers = [(32, False, 0.0), (32, False, 0.0)]
FINAL_SIZE = 1                        # final_size = 1, final_activation = 'sigmoid'

# dot_general dimension numbers: contract last dims of both operands (A @ B^T)
_NT_DIMS = (((1,), (1,)), ((), ()))


def _round_up(x, m):
    return ((x + m - 1) // m) * m


def _choose_row_tile(n):
    """Row tile (lane width of the output block). Multiple of 128.

    Large tiles (512-1024) amortize the ~0.35us per-grid-step overhead, but we
    keep >=2 grid steps when n allows so the 'parallel' axis can shard across
    v7x's two TensorCores. VMEM use stays < 100 KiB even at 1024.
    """
    n128 = _round_up(max(n, 1), 128)
    if n128 <= 256:
        return 128
    half = (n128 // 2) // 128 * 128
    return max(128, min(1024, half))


# ------------------------------ Pallas kernel ------------------------------
def _mlp_item_kernel(x_ref, w1_ref, b1_ref, w2_ref, b2_ref, w3_ref, b3_ref, o_ref):
    # x_ref: (TM, D_ITEM) bf16 item embeddings. The (constant) user half of the
    # concat is already folded into b1_ref, so W1 here is only the item block.
    x = x_ref[...].astype(jnp.float32)                                   # (TM, 32)
    h1 = jnp.dot(x, w1_ref[...], preferred_element_type=jnp.float32) + b1_ref[...]
    h1 = jnp.maximum(h1, 0.0)                                            # relu
    h2 = jnp.dot(h1, w2_ref[...], preferred_element_type=jnp.float32) + b2_ref[...]
    h2 = jnp.maximum(h2, 0.0)                                            # relu
    # Final layer fused with the lane-dense relayout: (8,32) x (TM,32)^T -> (8,TM)
    # (w3 is replicated to 8 identical rows in the wrapper; take row 0).
    # Scores land on the LANE axis -> unmasked, lane-dense (1, TM) store.
    z = lax.dot_general(w3_ref[...], h2, _NT_DIMS,
                        preferred_element_type=jnp.float32)              # (8, TM)
    z = z[0:1, :] + b3_ref[...]                                          # (1, TM)
    o_ref[...] = jax.nn.sigmoid(z)                                       # (1, TM)


def _run_item_mlp(items, w1_item, b1_eff, w2, b2, w3_rows, b3, tm):
    """items: (n_pad, D_ITEM) bf16 with n_pad % tm == 0 -> scores (1, n_pad) f32."""
    n_pad, d_item = items.shape
    h1 = w1_item.shape[1]
    h2 = w2.shape[1]
    return pl.pallas_call(
        _mlp_item_kernel,
        out_shape=jax.ShapeDtypeStruct((1, n_pad), jnp.float32),
        grid_spec=pltpu.PrefetchScalarGridSpec(
            num_scalar_prefetch=0,
            grid=(n_pad // tm,),
            in_specs=[
                pl.BlockSpec((tm, d_item), lambda i: (i, 0)),   # item embeds (bf16)
                pl.BlockSpec((d_item, h1), lambda i: (0, 0)),   # W1 (item block)
                pl.BlockSpec((1, h1), lambda i: (0, 0)),        # b1_eff (user folded)
                pl.BlockSpec((h1, h2), lambda i: (0, 0)),       # W2
                pl.BlockSpec((1, h2), lambda i: (0, 0)),        # b2
                pl.BlockSpec((8, h2), lambda i: (0, 0)),        # W3^T replicated x8
                pl.BlockSpec((1, 1), lambda i: (0, 0)),         # b3
            ],
            out_specs=pl.BlockSpec((1, tm), lambda i: (0, i)),  # lane-dense scores
        ),
        compiler_params=pltpu.CompilerParams(
            dimension_semantics=("parallel",)),
    )(items, w1_item, b1_eff, w2, b2, w3_rows, b3)


# --------------------------- full forward (glue) ----------------------------
@jax.jit
def interaction_recommender_forward(user_ids, item_ids, user_table, item_table,
                                    mlp_params):
    w1, b1, w2, b2, w3, b3 = mlp_params
    n = item_ids.shape[0]
    tm = _choose_row_tile(n)
    n_pad = _round_up(n, tm)

    if user_ids.shape[0] != 1:
        # TODO(synk): multi-row query_users batch (no expand branch) would need a
        # per-row user-bias stream; only the single-query-user path is fused here.
        raise NotImplementedError("Pallas path implements the single-query-user branch")

    # Recommender.forward: embedding lookup (first element of the tuple).
    u_emb = user_table[user_ids]                          # (1, D_USER) f32

    # Fold the constant user contribution into the first-layer bias.
    # (query-dependent -> recomputed per call, never cached as a parameter)
    b1_eff = b1 + u_emb @ w1[:D_USER]                     # (1, H1)
    w1_item = w1[D_USER:]                                 # (D_ITEM, H1)

    # Pad ids *before* the gather so only one [n_pad, D_ITEM] array is ever
    # materialized; stream it in bf16 (f32 accumulation happens in-kernel).
    padded_ids = jnp.pad(item_ids, (0, n_pad - n))
    items = item_table[padded_ids].astype(jnp.bfloat16)   # (n_pad, D_ITEM)

    # W3^T replicated to 8 rows so the final trans-B dot has a full sublane tile.
    w3_rows = jnp.tile(w3.T, (8, 1))                      # (8, H2)

    scores = _run_item_mlp(items, w1_item, b1_eff, w2, b2, w3_rows, b3, tm)
    return scores[0, :n]                                  # squeeze(1) + drop padding


# ------------------------- parameter initialization -------------------------
def init_params(key, n_users=16, n_items=64):
    ks = jax.random.split(key, 6)
    user_table = jax.random.normal(ks[0], (n_users, D_USER), jnp.float32) * 0.1
    item_table = jax.random.normal(ks[1], (n_items, D_ITEM), jnp.float32) * 0.1

    def linear_init(k, fan_in, fan_out):
        # PyTorch nn.Linear default weight init; bias filled 0.0 by MLP.__init__.
        bound = 1.0 / (fan_in ** 0.5)
        w = jax.random.uniform(k, (fan_in, fan_out), jnp.float32, -bound, bound)
        b = jnp.zeros((1, fan_out), jnp.float32)
        return w, b

    w1, b1 = linear_init(ks[2], INPUT_SIZE, HIDDEN[0])
    w2, b2 = linear_init(ks[3], HIDDEN[0], HIDDEN[1])
    w3, b3 = linear_init(ks[4], HIDDEN[1], FINAL_SIZE)
    return user_table, item_table, (w1, b1, w2, b2, w3, b3)


# ------------------------------- reference ----------------------------------
def reference_forward(user_ids, item_ids, user_table, item_table, mlp_params):
    w1, b1, w2, b2, w3, b3 = mlp_params
    qu = user_table[user_ids]
    qi = item_table[item_ids]
    qu = jnp.broadcast_to(qu, (qi.shape[0], D_USER))
    x = jnp.concatenate([qu, qi], axis=1)
    h1 = jnp.maximum(x @ w1 + b1, 0.0)
    h2 = jnp.maximum(h1 @ w2 + b2, 0.0)
    return jax.nn.sigmoid(h2 @ w3 + b3)[:, 0]


if __name__ == "__main__":
    key = jax.random.PRNGKey(0)
    user_table, item_table, mlp_params = init_params(key)

    # Case 1: one query user, 8 query items (mirrors the expand-to-items branch).
    user_ids = jnp.array([3], dtype=jnp.int32)
    item_ids = jnp.arange(8, dtype=jnp.int32)
    scores = interaction_recommender_forward(user_ids, item_ids,
                                             user_table, item_table, mlp_params)
    scores = jax.block_until_ready(scores)
    ref = reference_forward(user_ids, item_ids, user_table, item_table, mlp_params)
    assert scores.shape == (8,)
    # bf16 item stream -> small rounding vs the f32 reference.
    assert jnp.allclose(scores, ref, atol=1e-2, rtol=1e-2), (scores, ref)

    # Case 2: larger item list (exercises padding + multi-step parallel grid).
    item_ids2 = (jnp.arange(300, dtype=jnp.int32) * 7) % 64
    scores2 = jax.block_until_ready(
        interaction_recommender_forward(user_ids, item_ids2,
                                        user_table, item_table, mlp_params))
    ref2 = reference_forward(user_ids, item_ids2, user_table, item_table, mlp_params)
    assert scores2.shape == (300,)
    assert jnp.allclose(scores2, ref2, atol=1e-2, rtol=1e-2)

    print("KERNEL_OK")
</pallas_src>

<mosaic_0001>
module attributes {stable_mosaic.version = 11 : i64} {
  func.func @_mlp_item_kernel(%arg0: i32, %arg1: memref<128x32xbf16, #tpu.memory_space<vmem>>, %arg2: memref<32x32xf32, #tpu.memory_space<vmem>>, %arg3: memref<1x32xf32, #tpu.memory_space<vmem>>, %arg4: memref<32x32xf32, #tpu.memory_space<vmem>>, %arg5: memref<1x32xf32, #tpu.memory_space<vmem>>, %arg6: memref<8x32xf32, #tpu.memory_space<vmem>>, %arg7: memref<1x1xf32, #tpu.memory_space<vmem>>, %arg8: memref<1x128xf32, #tpu.memory_space<vmem>>) attributes {dimension_semantics = [#tpu.dimension_semantics<parallel>], iteration_bounds = array<i64: 1>, scalar_prefetch = 0 : i64, scratch_operands = 0 : i64, tpu.core_type = #tpu.core_type<tc>, window_params = [{transform_indices = @transform_0, window_bounds = array<i64: 128, 32>}, {pipeline_mode = #tpu.pipeline_mode<synchronous>, transform_indices = @transform_1, window_bounds = array<i64: 32, 32>}, {pipeline_mode = #tpu.pipeline_mode<synchronous>, transform_indices = @transform_2, window_bounds = array<i64: 1, 32>}, {pipeline_mode = #tpu.pipeline_mode<synchronous>, transform_indices = @transform_3, window_bounds = array<i64: 32, 32>}, {pipeline_mode = #tpu.pipeline_mode<synchronous>, transform_indices = @transform_4, window_bounds = array<i64: 1, 32>}, {pipeline_mode = #tpu.pipeline_mode<synchronous>, transform_indices = @transform_5, window_bounds = array<i64: 8, 32>}, {pipeline_mode = #tpu.pipeline_mode<synchronous>, transform_indices = @transform_6, window_bounds = array<i64: 1, 1>}, {transform_indices = @transform_7, window_bounds = array<i64: 1, 128>}]} {
    %c0 = arith.constant 0 : index
    %c0_0 = arith.constant 0 : index
    %0 = vector.load %arg1[%c0, %c0_0] : memref<128x32xbf16, #tpu.memory_space<vmem>>, vector<128x32xbf16>
    %1 = arith.extf %0 : vector<128x32xbf16> to vector<128x32xf32>
    %c0_1 = arith.constant 0 : index
    %c0_2 = arith.constant 0 : index
    %2 = vector.load %arg2[%c0_1, %c0_2] : memref<32x32xf32, #tpu.memory_space<vmem>>, vector<32x32xf32>
    %cst = arith.constant dense<0.000000e+00> : vector<128x32xf32>
    %3 = tpu.matmul %1, %2, %cst {dimension_numbers = #tpu.dot_dimension_numbers<[1], [0], [0], [1], [0, 0, 1, 1], [], []>} : vector<128x32xf32>, vector<32x32xf32>, vector<128x32xf32> -> vector<128x32xf32>
    %c0_3 = arith.constant 0 : index
    %c0_4 = arith.constant 0 : index
    %4 = vector.load %arg3[%c0_3, %c0_4] : memref<1x32xf32, #tpu.memory_space<vmem>>, vector<1x32xf32>
    %5 = vector.broadcast %4 : vector<1x32xf32> to vector<128x32xf32>
    %6 = arith.addf %3, %5 : vector<128x32xf32>
    %cst_5 = arith.constant 0.000000e+00 : f32
    %7 = vector.broadcast %cst_5 : f32 to vector<128x32xf32>
    %8 = arith.maximumf %6, %7 : vector<128x32xf32>
    %c0_6 = arith.constant 0 : index
    %c0_7 = arith.constant 0 : index
    %9 = vector.load %arg4[%c0_6, %c0_7] : memref<32x32xf32, #tpu.memory_space<vmem>>, vector<32x32xf32>
    %cst_8 = arith.constant dense<0.000000e+00> : vector<128x32xf32>
    %10 = tpu.matmul %8, %9, %cst_8 {dimension_numbers = #tpu.dot_dimension_numbers<[1], [0], [0], [1], [0, 0, 1, 1], [], []>} : vector<128x32xf32>, vector<32x32xf32>, vector<128x32xf32> -> vector<128x32xf32>
    %c0_9 = arith.constant 0 : index
    %c0_10 = arith.constant 0 : index
    %11 = vector.load %arg5[%c0_9, %c0_10] : memref<1x32xf32, #tpu.memory_space<vmem>>, vector<1x32xf32>
    %12 = vector.broadcast %11 : vector<1x32xf32> to vector<128x32xf32>
    %13 = arith.addf %10, %12 : vector<128x32xf32>
    %cst_11 = arith.constant 0.000000e+00 : f32
    %14 = vector.broadcast %cst_11 : f32 to vector<128x32xf32>
    %15 = arith.maximumf %13, %14 : vector<128x32xf32>
    %c0_12 = arith.constant 0 : index
    %c0_13 = arith.constant 0 : index
    %16 = vector.load %arg6[%c0_12, %c0_13] : memref<8x32xf32, #tpu.memory_space<vmem>>, vector<8x32xf32>
    %cst_14 = arith.constant dense<0.000000e+00> : vector<8x128xf32>
    %17 = tpu.matmul %16, %15, %cst_14 {dimension_numbers = #tpu.dot_dimension_numbers<[1], [1], [0], [0], [0, 0, 1, 0], [], []>} : vector<8x32xf32>, vector<128x32xf32>, vector<8x128xf32> -> vector<8x128xf32>
    %18 = vector.extract_strided_slice %17 {offsets = [0, 0], sizes = [1, 128], strides = [1, 1]} : vector<8x128xf32> to vector<1x128xf32>
    %c0_15 = arith.constant 0 : index
    %c0_16 = arith.constant 0 : index
    %19 = vector.load %arg7[%c0_15, %c0_16] : memref<1x1xf32, #tpu.memory_space<vmem>>, vector<1x1xf32>
    %20 = vector.broadcast %19 : vector<1x1xf32> to vector<1x128xf32>
    %21 = arith.addf %18, %20 : vector<1x128xf32>
    %22 = arith.negf %21 : vector<1x128xf32>
    %23 = math.exp %22 : vector<1x128xf32>
    %cst_17 = arith.constant 1.000000e+00 : f32
    %24 = vector.broadcast %cst_17 : f32 to vector<1x128xf32>
    %25 = arith.addf %24, %23 : vector<1x128xf32>
    %26 = arith.divf %24, %25 : vector<1x128xf32>
    %c0_18 = arith.constant 0 : index
    %c0_19 = arith.constant 0 : index
    %27 = vector.load %arg8[%c0_18, %c0_19] : memref<1x128xf32, #tpu.memory_space<vmem>>, vector<1x128xf32>
    tpu.vector_store %arg8[%c0_18, %c0_19], %26 {strides = array<i32>} : memref<1x128xf32, #tpu.memory_space<vmem>>, vector<1x128xf32>,
    return
  }
  func.func @transform_0(%arg0: i32) -> (i32, i32) {
    %c0_i32 = arith.constant 0 : i32
    %c0_i32_0 = arith.constant 0 : i32
    return %arg0, %c0_i32 : i32, i32
  }
  func.func @transform_1(%arg0: i32) -> (i32, i32) {
    %c0_i32 = arith.constant 0 : i32
    %c0_i32_0 = arith.constant 0 : i32
    %c0_i32_1 = arith.constant 0 : i32
    return %c0_i32, %c0_i32_0 : i32, i32
  }
  func.func @transform_2(%arg0: i32) -> (i32, i32) {
    %c0_i32 = arith.constant 0 : i32
    %c0_i32_0 = arith.constant 0 : i32
    %c0_i32_1 = arith.constant 0 : i32
    return %c0_i32, %c0_i32_0 : i32, i32
  }
  func.func @transform_3(%arg0: i32) -> (i32, i32) {
    %c0_i32 = arith.constant 0 : i32
    %c0_i32_0 = arith.constant 0 : i32
    %c0_i32_1 = arith.constant 0 : i32
    return %c0_i32, %c0_i32_0 : i32, i32
  }
  func.func @transform_4(%arg0: i32) -> (i32, i32) {
    %c0_i32 = arith.constant 0 : i32
    %c0_i32_0 = arith.constant 0 : i32
    %c0_i32_1 = arith.constant 0 : i32
    return %c0_i32, %c0_i32_0 : i32, i32
  }
  func.func @transform_5(%arg0: i32) -> (i32, i32) {
    %c0_i32 = arith.constant 0 : i32
    %c0_i32_0 = arith.constant 0 : i32
    %c0_i32_1 = arith.constant 0 : i32
    return %c0_i32, %c0_i32_0 : i32, i32
  }
  func.func @transform_6(%arg0: i32) -> (i32, i32) {
    %c0_i32 = arith.constant 0 : i32
    %c0_i32_0 = arith.constant 0 : i32
    %c0_i32_1 = arith.constant 0 : i32
    return %c0_i32, %c0_i32_0 : i32, i32
  }
  func.func @transform_7(%arg0: i32) -> (i32, i32) {
    %c0_i32 = arith.constant 0 : i32
    %c0_i32_0 = arith.constant 0 : i32
    return %c0_i32, %arg0 : i32, i32
  }
}

</mosaic_0001>

<llo_original>
// kernel: interaction_recommender_forward.1
$region0: #{interaction_recommender_forward.1}
  #allocation0 [shape = 'u32[]', space=smem, size = 0x4, offset = 0x4, fixed_abs, tag = 'smem constant byte address 0x4 - core index']
  #allocation1 [shape = 'u32[144,128]{1,0:T(1,128)}', space=vmem, size = 0x12000, scoped, tag = 'internal scratch']
  #allocation2 [shape = 'f32[1,1]{1,0:T(1,128)S(1)}', space=vmem, size = 0x200, scoped, tag = 'scoped memory for interaction_recommender_forward.1']
  %s0 = inlined_call_operand.vmem [shape: bf16[128,32], index: 0, kind: input, shape index: {}]
  %s1 = inlined_call_operand.vmem [shape: f32[32,32], index: 1, kind: input, shape index: {}]
  %s2 = inlined_call_operand.vmem [shape: f32[1,32], index: 2, kind: input, shape index: {}]
  %s3 = inlined_call_operand.vmem [shape: f32[32,32], index: 3, kind: input, shape index: {}]
  %s4 = inlined_call_operand.vmem [shape: f32[1,32], index: 4, kind: input, shape index: {}]
  %s5 = inlined_call_operand.vmem [shape: f32[8,32], index: 5, kind: input, shape index: {}]
  %s6 = inlined_call_operand.<no memory space> [shape: f32[1,1], index: 6, kind: input, shape index: {}]
  %s7 = inlined_call_operand.vmem [shape: f32[1,128], index: 7, kind: output, shape index: {}]
  %s8 = sld [smem:[#allocation0]]
  $region38: #{interaction_recommender_forward.1} parent=0
    _
  %s10 = ssub.s32 1, %s8
  %s11 = scalar_select 0, %s10, %s8
  %v12 = vstv %s6
  %13 = vst [vmem:[#allocation2] sm:$0x1] %v12
  // Predicated region
  $region2: #{interaction_recommender_forward.1} parent=0 // pred_check
    _
  $region3: #{interaction_recommender_forward.1} parent=0 // pred_check_branch
    %15 = sbr.rel (0) target = $region5
  $region4: #{interaction_recommender_forward.1} parent=0 // pred_region
    _
  $region5: #{interaction_recommender_forward.1} parent=0 // pred_fallthru
    _
  // Predicated region
  $region6: #{interaction_recommender_forward.1} parent=0 // pred_check
    _
  $region7: #{interaction_recommender_forward.1} parent=0 // pred_check_branch
    %17 = sbr.rel (0) target = $region9
  $region8: #{interaction_recommender_forward.1} parent=0 // pred_region
    _
  $region9: #{interaction_recommender_forward.1} parent=0 // pred_fallthru
    _
  // Predicated region
  $region10: #{interaction_recommender_forward.1} parent=0 // pred_check
    _
  $region11: #{interaction_recommender_forward.1} parent=0 // pred_check_branch
    %19 = sbr.rel (0) target = $region13
  $region12: #{interaction_recommender_forward.1} parent=0 // pred_region
    _
  $region13: #{interaction_recommender_forward.1} parent=0 // pred_fallthru
    _
  // Predicated region
  $region14: #{interaction_recommender_forward.1} parent=0 // pred_check
    _
  $region15: #{interaction_recommender_forward.1} parent=0 // pred_check_branch
    %21 = sbr.rel (0) target = $region17
  $region16: #{interaction_recommender_forward.1} parent=0 // pred_region
    _
  $region17: #{interaction_recommender_forward.1} parent=0 // pred_fallthru
    _
  // Predicated region
  $region18: #{interaction_recommender_forward.1} parent=0 // pred_check
    _
  $region19: #{interaction_recommender_forward.1} parent=0 // pred_check_branch
    %23 = sbr.rel (0) target = $region21
  $region20: #{interaction_recommender_forward.1} parent=0 // pred_region
    _
  $region21: #{interaction_recommender_forward.1} parent=0 // pred_fallthru
    _
  // Predicated region
  $region22: #{interaction_recommender_forward.1} parent=0 // pred_check
    _
  $region23: #{interaction_recommender_forward.1} parent=0 // pred_check_branch
    %25 = sbr.rel (0) target = $region25
  $region24: #{interaction_recommender_forward.1} parent=0 // pred_region
    _
  $region25: #{interaction_recommender_forward.1} parent=0 // pred_fallthru
    _
  // Predicated region
  $region26: #{interaction_recommender_forward.1} parent=0 // pred_check
    _
  $region27: #{interaction_recommender_forward.1} parent=0 // pred_check_branch
    %27 = sbr.rel (0) target = $region29
  $region28: #{interaction_recommender_forward.1} parent=0 // pred_region
    _
  $region29: #{interaction_recommender_forward.1} parent=0 // pred_fallthru
    _
  %v28 = vld [vmem:[%s0] sm:$0xf]
  %v29 = vld [vmem:[%s0 + $0x4] sm:$0xf]
  %v30 = vld [vmem:[%s0 + $0x8] sm:$0xf]
  %v31 = vld [vmem:[%s0 + $0xc] sm:$0xf]
  %v32 = vld [vmem:[%s0 + $0x10] sm:$0xf]
  %v33 = vld [vmem:[%s0 + $0x14] sm:$0xf]
  %v34 = vld [vmem:[%s0 + $0x18] sm:$0xf]
  %v35 = vld [vmem:[%s0 + $0x1c] sm:$0xf]
  %v36 = vld [vmem:[%s0 + $0x20] sm:$0xf]
  %v37 = vld [vmem:[%s0 + $0x24] sm:$0xf]
  %v38 = vld [vmem:[%s0 + $0x28] sm:$0xf]
  %v39 = vld [vmem:[%s0 + $0x2c] sm:$0xf]
  %v40 = vld [vmem:[%s0 + $0x30] sm:$0xf]
  %v41 = vld [vmem:[%s0 + $0x34] sm:$0xf]
  %v42 = vld [vmem:[%s0 + $0x38] sm:$0xf]
  %v43 = vld [vmem:[%s0 + $0x3c] sm:$0xf]
  %v44 = vunpack.c.l.bf16 %v28
  %v45 = vunpack.c.l.bf16 %v29
  %v46 = vunpack.c.l.bf16 %v30
  %v47 = vunpack.c.l.bf16 %v31
  %v48 = vunpack.c.l.bf16 %v32
  %v49 = vunpack.c.l.bf16 %v33
  %v50 = vunpack.c.l.bf16 %v34
  %v51 = vunpack.c.l.bf16 %v35
  %v52 = vunpack.c.l.bf16 %v36
  %v53 = vunpack.c.l.bf16 %v37
  %v54 = vunpack.c.l.bf16 %v38
  %v55 = vunpack.c.l.bf16 %v39
  %v56 = vunpack.c.l.bf16 %v40
  %v57 = vunpack.c.l.bf16 %v41
  %v58 = vunpack.c.l.bf16 %v42
  %v59 = vunpack.c.l.bf16 %v43
  %v60 = vld [vmem:[%s1] sm:$0xff]
  %v61 = vld [vmem:[%s1 + $0x8] sm:$0xff]
  %v62 = vld [vmem:[%s1 + $0x10] sm:$0xff]
  %v63 = vld [vmem:[%s1 + $0x18] sm:$0xff]
  %v64 = vld [vmem:[%s2] sm:$0x1]
  %v66 = vlaneseq
  %v67 = vshrl.u32 %v66, 7
  %v68 = vsub.s32 0, %v67
  %v69 = vrot.slane %v64, %v68
  %vm71 = vcmask 261120
  %v73 = vsel %vm71, %v44, 0
  %v76 = vsel %vm71, %v45, 0
  %v79 = vsel %vm71, %v46, 0
  %v82 = vsel %vm71, %v47, 0
  %v85 = vsel %vm71, %v48, 0
  %v88 = vsel %vm71, %v49, 0
  %v91 = vsel %vm71, %v50, 0
  %v94 = vsel %vm71, %v51, 0
  %v97 = vsel %vm71, %v52, 0
  %v100 = vsel %vm71, %v53, 0
  %v103 = vsel %vm71, %v54, 0
  %v106 = vsel %vm71, %v55, 0
  %v109 = vsel %vm71, %v56, 0
  %v112 = vsel %vm71, %v57, 0
  %v115 = vsel %vm71, %v58, 0
  %v118 = vsel %vm71, %v59, 0
  %120 = vmatprep.subr.mxu0 0.0
  %121 = vmatpush1.msra.mxu0 %v60
  %122 = vmatprep.subr.mxu0 0.0
  %123 = vmatpush1.msra.mxu0 %v61
  %124 = vmatprep.subr.mxu0 0.0
  %125 = vmatpush1.msra.mxu0 %v62
  %126 = vmatprep.subr.mxu0 0.0
  %127 = vmatpush1.msra.mxu0 %v63
  %128 = vmatprep.subr.mxu0 0.0
  %129 = vmatpush1.msra.mxu0 0.0
  %130 = vmatprep.subr.mxu0 0.0
  %131 = vmatpush1.msra.mxu0 0.0
  %132 = vmatprep.subr.mxu0 0.0
  %133 = vmatpush1.msra.mxu0 0.0
  %134 = vmatprep.subr.mxu0 0.0
  %135 = vmatpush1.msra.mxu0 0.0
  %136 = vmatprep.subr.mxu0 0.0
  %137 = vmatpush1.msra.mxu0 0.0
  %138 = vmatprep.subr.mxu0 0.0
  %139 = vmatpush1.msra.mxu0 0.0
  %140 = vmatprep.subr.mxu0 0.0
  %141 = vmatpush1.msra.mxu0 0.0
  %142 = vmatprep.subr.mxu0 0.0
  %143 = vmatpush1.msra.mxu0 0.0
  %144 = vmatprep.subr.mxu0 0.0
  %145 = vmatpush1.msra.mxu0 0.0
  %146 = vmatprep.subr.mxu0 0.0
  %147 = vmatpush1.msra.mxu0 0.0
  %148 = vmatprep.subr.mxu0 0.0
  %149 = vmatpush1.msra.mxu0 0.0
  %150 = vmatprep.subr.mxu0 0.0
  %151 = vmatpush1.msra.mxu0 0.0
  %152 = vmatprep.subr.mxu0 0.0
  %153 = vmatpush1.msra.mxu0 0.0
  %154 = vmatprep.subr.mxu0 0.0
  %155 = vmatpush1.msra.mxu0 0.0
  %156 = vmatprep.subr.mxu0 0.0
  %157 = vmatpush1.msra.mxu0 0.0
  %158 = vmatprep.subr.mxu0 0.0
  %159 = vmatpush1.msra.mxu0 0.0
  %160 = vmatprep.subr.mxu0 0.0
  %161 = vmatpush1.msra.mxu0 0.0
  %162 = vmatprep.subr.mxu0 0.0
  %163 = vmatpush1.msra.mxu0 0.0
  %164 = vmatprep.subr.mxu0 0.0
  %165 = vmatpush1.msra.mxu0 0.0
  %166 = vmatprep.subr.mxu0 0.0
  %167 = vmatpush1.msra.mxu0 0.0
  %168 = vmatprep.subr.mxu0 0.0
  %169 = vmatpush1.msra.mxu0 0.0
  %170 = vmatprep.subr.mxu0 0.0
  %171 = vmatpush1.msra.mxu0 0.0
  %172 = vmatprep.subr.mxu0 0.0
  %173 = vmatpush1.msra.mxu0 0.0
  %174 = vmatprep.subr.mxu0 0.0
  %175 = vmatpush1.msra.mxu0 0.0
  %176 = vmatprep.subr.mxu0 0.0
  %177 = vmatpush1.msra.mxu0 0.0
  %178 = vmatprep.subr.mxu0 0.0
  %179 = vmatpush1.msra.mxu0 0.0
  %180 = vmatprep.subr.mxu0 0.0
  %181 = vmatpush1.msra.mxu0 0.0
  %182 = vmatprep.subr.mxu0 0.0
  %183 = vmatpush1.msra.mxu0 0.0
  %184 = vmatprep.mubr.f32.mxu0 0.0
  %185 = vmatmul.mubr.f32.gmra.mrb[0].mxu0 %v73
  %v186 = vpop.f32.mrb[0].mxu0
  %v187 = vadd.f32 %v69, %v186
  %v188 = vpop.f32.mrb[0].mxu0
  %189 = vmatprep.mubr.f32.mxu0 0.0
  %190 = vmatmul.mubr.f32.gmra.mrb[0].mxu0 %v76
  %v191 = vpop.f32.mrb[0].mxu0
  %v192 = vadd.f32 %v69, %v191
  %v193 = vpop.f32.mrb[0].mxu0
  %194 = vmatprep.mubr.f32.mxu0 0.0
  %195 = vmatmul.mubr.f32.gmra.mrb[0].mxu0 %v79
  %v196 = vpop.f32.mrb[0].mxu0
  %v197 = vadd.f32 %v69, %v196
  %v198 = vpop.f32.mrb[0].mxu0
  %199 = vmatprep.mubr.f32.mxu0 0.0
  %200 = vmatmul.mubr.f32.gmra.mrb[0].mxu0 %v82
  %v201 = vpop.f32.mrb[0].mxu0
  %v202 = vadd.f32 %v69, %v201
  %v203 = vpop.f32.mrb[0].mxu0
  %204 = vmatprep.mubr.f32.mxu0 0.0
  %205 = vmatmul.mubr.f32.gmra.mrb[0].mxu0 %v85
  %v206 = vpop.f32.mrb[0].mxu0
  %v207 = vadd.f32 %v69, %v206
  %v208 = vpop.f32.mrb[0].mxu0
  %209 = vmatprep.mubr.f32.mxu0 0.0
  %210 = vmatmul.mubr.f32.gmra.mrb[0].mxu0 %v88
  %v211 = vpop.f32.mrb[0].mxu0
  %v212 = vadd.f32 %v69, %v211
  %v213 = vpop.f32.mrb[0].mxu0
  %214 = vmatprep.mubr.f32.mxu0 0.0
  %215 = vmatmul.mubr.f32.gmra.mrb[0].mxu0 %v91
  %v216 = vpop.f32.mrb[0].mxu0
  %v217 = vadd.f32 %v69, %v216
  %v218 = vpop.f32.mrb[0].mxu0
  %219 = vmatprep.mubr.f32.mxu0 0.0
  %220 = vmatmul.mubr.f32.gmra.mrb[0].mxu0 %v94
  %v221 = vpop.f32.mrb[0].mxu0
  %v222 = vadd.f32 %v69, %v221
  %v223 = vpop.f32.mrb[0].mxu0
  %224 = vmatprep.mubr.f32.mxu0 0.0
  %225 = vmatmul.mubr.f32.gmra.mrb[0].mxu0 %v97
  %v226 = vpop.f32.mrb[0].mxu0
  %v227 = vadd.f32 %v69, %v226
  %v228 = vpop.f32.mrb[0].mxu0
  %229 = vmatprep.mubr.f32.mxu0 0.0
  %230 = vmatmul.mubr.f32.gmra.mrb[0].mxu0 %v100
  %v231 = vpop.f32.mrb[0].mxu0
  %v232 = vadd.f32 %v69, %v231
  %v233 = vpop.f32.mrb[0].mxu0
  %234 = vmatprep.mubr.f32.mxu0 0.0
  %235 = vmatmul.mubr.f32.gmra.mrb[0].mxu0 %v103
  %v236 = vpop.f32.mrb[0].mxu0
  %v237 = vadd.f32 %v69, %v236
  %v238 = vpop.f32.mrb[0].mxu0
  %239 = vmatprep.mubr.f32.mxu0 0.0
  %240 = vmatmul.mubr.f32.gmra.mrb[0].mxu0 %v106
  %v241 = vpop.f32.mrb[0].mxu0
  %v242 = vadd.f32 %v69, %v241
  %v243 = vpop.f32.mrb[0].mxu0
  %244 = vmatprep.mubr.f32.mxu0 0.0
  %245 = vmatmul.mubr.f32.gmra.mrb[0].mxu0 %v109
  %v246 = vpop.f32.mrb[0].mxu0
  %v247 = vadd.f32 %v69, %v246
  %v248 = vpop.f32.mrb[0].mxu0
  %249 = vmatprep.mubr.f32.mxu0 0.0
  %250 = vmatmul.mubr.f32.gmra.mrb[0].mxu0 %v112
  %v251 = vpop.f32.mrb[0].mxu0
  %v252 = vadd.f32 %v69, %v251
  %v253 = vpop.f32.mrb[0].mxu0
  %254 = vmatprep.mubr.f32.mxu0 0.0
  %255 = vmatmul.mubr.f32.gmra.mrb[0].mxu0 %v115
  %v256 = vpop.f32.mrb[0].mxu0
  %v257 = vadd.f32 %v69, %v256
  %v258 = vpop.f32.mrb[0].mxu0
  %259 = vmatprep.mubr.f32.mxu0 0.0
  %260 = vmatmul.mubr.f32.gmra.mrb[0].mxu0 %v118
  %v261 = vpop.f32.mrb[0].mxu0
  %v262 = vadd.f32 %v69, %v261
  %v263 = vpop.f32.mrb[0].mxu0
  %264 = vdwg.mxu0
  %v265 = vmax.f32 %v187, 0.0
  %v266 = vmax.f32 %v192, 0.0
  %v267 = vmax.f32 %v197, 0.0
  %v268 = vmax.f32 %v202, 0.0
  %v269 = vmax.f32 %v207, 0.0
  %v270 = vmax.f32 %v212, 0.0
  %v271 = vmax.f32 %v217, 0.0
  %v272 = vmax.f32 %v222, 0.0
  %v273 = vmax.f32 %v227, 0.0
  %v274 = vmax.f32 %v232, 0.0
  %v275 = vmax.f32 %v237, 0.0
  %v276 = vmax.f32 %v242, 0.0
  %v277 = vmax.f32 %v247, 0.0
  %v278 = vmax.f32 %v252, 0.0
  %v279 = vmax.f32 %v257, 0.0
  %v280 = vmax.f32 %v262, 0.0
  %v281 = vld [vmem:[%s3] sm:$0xff]
  %v282 = vld [vmem:[%s3 + $0x8] sm:$0xff]
  %v283 = vld [vmem:[%s3 + $0x10] sm:$0xff]
  %v284 = vld [vmem:[%s3 + $0x18] sm:$0xff]
  %v285 = vld [vmem:[%s4] sm:$0x1]
  %v287 = vlaneseq
  %v288 = vshrl.u32 %v287, 7
  %v289 = vsub.s32 0, %v288
  %v290 = vrot.slane %v285, %v289
  %v293 = vsel %vm71, %v265, 0
  %v296 = vsel %vm71, %v266, 0
  %v299 = vsel %vm71, %v267, 0
  %v302 = vsel %vm71, %v268, 0
  %v305 = vsel %vm71, %v269, 0
  %v308 = vsel %vm71, %v270, 0
  %v311 = vsel %vm71, %v271, 0
  %v314 = vsel %vm71, %v272, 0
  %v317 = vsel %vm71, %v273, 0
  %v320 = vsel %vm71, %v274, 0
  %v323 = vsel %vm71, %v275, 0
  %v326 = vsel %vm71, %v276, 0
  %v329 = vsel %vm71, %v277, 0
  %v332 = vsel %vm71, %v278, 0
  %v335 = vsel %vm71, %v279, 0
  %v338 = vsel %vm71, %v280, 0
  %340 = vmatprep.subr.mxu0 0.0
  %341 = vmatpush1.msra.mxu0 %v281
  %342 = vmatprep.subr.mxu0 0.0
  %343 = vmatpush1.msra.mxu0 %v282
  %344 = vmatprep.subr.mxu0 0.0
  %345 = vmatpush1.msra.mxu0 %v283
  %346 = vmatprep.subr.mxu0 0.0
  %347 = vmatpush1.msra.mxu0 %v284
  %348 = vmatprep.subr.mxu0 0.0
  %349 = vmatpush1.msra.mxu0 0.0
  %350 = vmatprep.subr.mxu0 0.0
  %351 = vmatpush1.msra.mxu0 0.0
  %352 = vmatprep.subr.mxu0 0.0
  %353 = vmatpush1.msra.mxu0 0.0
  %354 = vmatprep.subr.mxu0 0.0
  %355 = vmatpush1.msra.mxu0 0.0
  %356 = vmatprep.subr.mxu0 0.0
  %357 = vmatpush1.msra.mxu0 0.0
  %358 = vmatprep.subr.mxu0 0.0
  %359 = vmatpush1.msra.mxu0 0.0
  %360 = vmatprep.subr.mxu0 0.0
  %361 = vmatpush1.msra.mxu0 0.0
  %362 = vmatprep.subr.mxu0 0.0
  %363 = vmatpush1.msra.mxu0 0.0
  %364 = vmatprep.subr.mxu0 0.0
  %365 = vmatpush1.msra.mxu0 0.0
  %366 = vmatprep.subr.mxu0 0.0
  %367 = vmatpush1.msra.mxu0 0.0
  %368 = vmatprep.subr.mxu0 0.0
  %369 = vmatpush1.msra.mxu0 0.0
  %370 = vmatprep.subr.mxu0 0.0
  %371 = vmatpush1.msra.mxu0 0.0
  %372 = vmatprep.subr.mxu0 0.0
  %373 = vmatpush1.msra.mxu0 0.0
  %374 = vmatprep.subr.mxu0 0.0
  %375 = vmatpush1.msra.mxu0 0.0
  %376 = vmatprep.subr.mxu0 0.0
  %377 = vmatpush1.msra.mxu0 0.0
  %378 = vmatprep.subr.mxu0 0.0
  %379 = vmatpush1.msra.mxu0 0.0
  %380 = vmatprep.subr.mxu0 0.0
  %381 = vmatpush1.msra.mxu0 0.0
  %382 = vmatprep.subr.mxu0 0.0
  %383 = vmatpush1.msra.mxu0 0.0
  %384 = vmatprep.subr.mxu0 0.0
  %385 = vmatpush1.msra.mxu0 0.0
  %386 = vmatprep.subr.mxu0 0.0
  %387 = vmatpush1.msra.mxu0 0.0
  %388 = vmatprep.subr.mxu0 0.0
  %389 = vmatpush1.msra.mxu0 0.0
  %390 = vmatprep.subr.mxu0 0.0
  %391 = vmatpush1.msra.mxu0 0.0
  %392 = vmatprep.subr.mxu0 0.0
  %393 = vmatpush1.msra.mxu0 0.0
  %394 = vmatprep.subr.mxu0 0.0
  %395 = vmatpush1.msra.mxu0 0.0
  %396 = vmatprep.subr.mxu0 0.0
  %397 = vmatpush1.msra.mxu0 0.0
  %398 = vmatprep.subr.mxu0 0.0
  %399 = vmatpush1.msra.mxu0 0.0
  %400 = vmatprep.subr.mxu0 0.0
  %401 = vmatpush1.msra.mxu0 0.0
  %402 = vmatprep.subr.mxu0 0.0
  %403 = vmatpush1.msra.mxu0 0.0
  %404 = vmatprep.mubr.f32.mxu0 0.0
  %405 = vmatmul.mubr.f32.gmra.mrb[0].mxu0 %v293
  %v406 = vpop.f32.mrb[0].mxu0
  %v407 = vadd.f32 %v290, %v406
  %v408 = vpop.f32.mrb[0].mxu0
  %409 = vmatprep.mubr.f32.mxu0 0.0
  %410 = vmatmul.mubr.f32.gmra.mrb[0].mxu0 %v296
  %v411 = vpop.f32.mrb[0].mxu0
  %v412 = vadd.f32 %v290, %v411
  %v413 = vpop.f32.mrb[0].mxu0
  %414 = vmatprep.mubr.f32.mxu0 0.0
  %415 = vmatmul.mubr.f32.gmra.mrb[0].mxu0 %v299
  %v416 = vpop.f32.mrb[0].mxu0
  %v417 = vadd.f32 %v290, %v416
  %v418 = vpop.f32.mrb[0].mxu0
  %419 = vmatprep.mubr.f32.mxu0 0.0
  %420 = vmatmul.mubr.f32.gmra.mrb[0].mxu0 %v302
  %v421 = vpop.f32.mrb[0].mxu0
  %v422 = vadd.f32 %v290, %v421
  %v423 = vpop.f32.mrb[0].mxu0
  %424 = vmatprep.mubr.f32.mxu0 0.0
  %425 = vmatmul.mubr.f32.gmra.mrb[0].mxu0 %v305
  %v426 = vpop.f32.mrb[0].mxu0
  %v427 = vadd.f32 %v290, %v426
  %v428 = vpop.f32.mrb[0].mxu0
  %429 = vmatprep.mubr.f32.mxu0 0.0
  %430 = vmatmul.mubr.f32.gmra.mrb[0].mxu0 %v308
  %v431 = vpop.f32.mrb[0].mxu0
  %v432 = vadd.f32 %v290, %v431
  %v433 = vpop.f32.mrb[0].mxu0
  %434 = vmatprep.mubr.f32.mxu0 0.0
  %435 = vmatmul.mubr.f32.gmra.mrb[0].mxu0 %v311
  %v436 = vpop.f32.mrb[0].mxu0
  %v437 = vadd.f32 %v290, %v436
  %v438 = vpop.f32.mrb[0].mxu0
  %439 = vmatprep.mubr.f32.mxu0 0.0
  %440 = vmatmul.mubr.f32.gmra.mrb[0].mxu0 %v314
  %v441 = vpop.f32.mrb[0].mxu0
  %v442 = vadd.f32 %v290, %v441
  %v443 = vpop.f32.mrb[0].mxu0
  %444 = vmatprep.mubr.f32.mxu0 0.0
  %445 = vmatmul.mubr.f32.gmra.mrb[0].mxu0 %v317
  %v446 = vpop.f32.mrb[0].mxu0
  %v447 = vadd.f32 %v290, %v446
  %v448 = vpop.f32.mrb[0].mxu0
  %449 = vmatprep.mubr.f32.mxu0 0.0
  %450 = vmatmul.mubr.f32.gmra.mrb[0].mxu0 %v320
  %v451 = vpop.f32.mrb[0].mxu0
  %v452 = vadd.f32 %v290, %v451
  %v453 = vpop.f32.mrb[0].mxu0
  %454 = vmatprep.mubr.f32.mxu0 0.0
  %455 = vmatmul.mubr.f32.gmra.mrb[0].mxu0 %v323
  %v456 = vpop.f32.mrb[0].mxu0
  %v457 = vadd.f32 %v290, %v456
  %v458 = vpop.f32.mrb[0].mxu0
  %459 = vmatprep.mubr.f32.mxu0 0.0
  %460 = vmatmul.mubr.f32.gmra.mrb[0].mxu0 %v326
  %v461 = vpop.f32.mrb[0].mxu0
  %v462 = vadd.f32 %v290, %v461
  %v463 = vpop.f32.mrb[0].mxu0
  %464 = vmatprep.mubr.f32.mxu0 0.0
  %465 = vmatmul.mubr.f32.gmra.mrb[0].mxu0 %v329
  %v466 = vpop.f32.mrb[0].mxu0
  %v467 = vadd.f32 %v290, %v466
  %v468 = vpop.f32.mrb[0].mxu0
  %469 = vmatprep.mubr.f32.mxu0 0.0
  %470 = vmatmul.mubr.f32.gmra.mrb[0].mxu0 %v332
  %v471 = vpop.f32.mrb[0].mxu0
  %v472 = vadd.f32 %v290, %v471
  %v473 = vpop.f32.mrb[0].mxu0
  %474 = vmatprep.mubr.f32.mxu0 0.0
  %475 = vmatmul.mubr.f32.gmra.mrb[0].mxu0 %v335
  %v476 = vpop.f32.mrb[0].mxu0
  %v477 = vadd.f32 %v290, %v476
  %v478 = vpop.f32.mrb[0].mxu0
  %479 = vmatprep.mubr.f32.mxu0 0.0
  %480 = vmatmul.mubr.f32.gmra.mrb[0].mxu0 %v338
  %v481 = vpop.f32.mrb[0].mxu0
  %v482 = vadd.f32 %v290, %v481
  %v483 = vpop.f32.mrb[0].mxu0
  %484 = vdwg.mxu0
  %v485 = vmax.f32 %v407, 0.0
  %v486 = vmax.f32 %v412, 0.0
  %v487 = vmax.f32 %v417, 0.0
  %v488 = vmax.f32 %v422, 0.0
  %v489 = vmax.f32 %v427, 0.0
  %v490 = vmax.f32 %v432, 0.0
  %v491 = vmax.f32 %v437, 0.0
  %v492 = vmax.f32 %v442, 0.0
  %v493 = vmax.f32 %v447, 0.0
  %v494 = vmax.f32 %v452, 0.0
  %v495 = vmax.f32 %v457, 0.0
  %v496 = vmax.f32 %v462, 0.0
  %v497 = vmax.f32 %v467, 0.0
  %v498 = vmax.f32 %v472, 0.0
  %v499 = vmax.f32 %v477, 0.0
  %v500 = vmax.f32 %v482, 0.0
  %v501 = vld [vmem:[%s5] sm:$0xff]
  %v503 = vsel %vm71, %v501, 0
  %v506 = vsel %vm71, %v485, 0
  %v509 = vsel %vm71, %v486, 0
  %v512 = vsel %vm71, %v487, 0
  %v515 = vsel %vm71, %v488, 0
  %v518 = vsel %vm71, %v489, 0
  %v521 = vsel %vm71, %v490, 0
  %v524 = vsel %vm71, %v491, 0
  %v527 = vsel %vm71, %v492, 0
  %v530 = vsel %vm71, %v493, 0
  %v533 = vsel %vm71, %v494, 0
  %v536 = vsel %vm71, %v495, 0
  %v539 = vsel %vm71, %v496, 0
  %v542 = vsel %vm71, %v497, 0
  %v545 = vsel %vm71, %v498, 0
  %v548 = vsel %vm71, %v499, 0
  %v551 = vsel %vm71, %v500, 0
  %553 = vmatprep.subr.mxu0 0.0
  %554 = vmatpush1.xpose.msra.mxu0 %v506
  %555 = vmatprep.subr.mxu0 0.0
  %556 = vmatpush1.xpose.msra.mxu0 %v509
  %557 = vmatprep.subr.mxu0 0.0
  %558 = vmatpush1.xpose.msra.mxu0 %v512
  %559 = vmatprep.subr.mxu0 0.0
  %560 = vmatpush1.xpose.msra.mxu0 %v515
  %561 = vmatprep.subr.mxu0 0.0
  %562 = vmatpush1.xpose.msra.mxu0 %v518
  %563 = vmatprep.subr.mxu0 0.0
  %564 = vmatpush1.xpose.msra.mxu0 %v521
  %565 = vmatprep.subr.mxu0 0.0
  %566 = vmatpush1.xpose.msra.mxu0 %v524
  %567 = vmatprep.subr.mxu0 0.0
  %568 = vmatpush1.xpose.msra.mxu0 %v527
  %569 = vmatprep.subr.mxu0 0.0
  %570 = vmatpush1.xpose.msra.mxu0 %v530
  %571 = vmatprep.subr.mxu0 0.0
  %572 = vmatpush1.xpose.msra.mxu0 %v533
  %573 = vmatprep.subr.mxu0 0.0
  %574 = vmatpush1.xpose.msra.mxu0 %v536
  %575 = vmatprep.subr.mxu0 0.0
  %576 = vmatpush1.xpose.msra.mxu0 %v539
  %577 = vmatprep.subr.mxu0 0.0
  %578 = vmatpush1.xpose.msra.mxu0 %v542
  %579 = vmatprep.subr.mxu0 0.0
  %580 = vmatpush1.xpose.msra.mxu0 %v545
  %581 = vmatprep.subr.mxu0 0.0
  %582 = vmatpush1.xpose.msra.mxu0 %v548
  %583 = vmatprep.subr.mxu0 0.0
  %584 = vmatpush1.xpose.msra.mxu0 %v551
  %585 = vmatprep.subr.mxu0 0.0
  %586 = vmatpush1.xpose.msra.mxu0 0.0
  %587 = vmatprep.subr.mxu0 0.0
  %588 = vmatpush1.xpose.msra.mxu0 0.0
  %589 = vmatprep.subr.mxu0 0.0
  %590 = vmatpush1.xpose.msra.mxu0 0.0
  %591 = vmatprep.subr.mxu0 0.0
  %592 = vmatpush1.xpose.msra.mxu0 0.0
  %593 = vmatprep.subr.mxu0 0.0
  %594 = vmatpush1.xpose.msra.mxu0 0.0
  %595 = vmatprep.subr.mxu0 0.0
  %596 = vmatpush1.xpose.msra.mxu0 0.0
  %597 = vmatprep.subr.mxu0 0.0
  %598 = vmatpush1.xpose.msra.mxu0 0.0
  %599 = vmatprep.subr.mxu0 0.0
  %600 = vmatpush1.xpose.msra.mxu0 0.0
  %601 = vmatprep.subr.mxu0 0.0
  %602 = vmatpush1.xpose.msra.mxu0 0.0
  %603 = vmatprep.subr.mxu0 0.0
  %604 = vmatpush1.xpose.msra.mxu0 0.0
  %605 = vmatprep.subr.mxu0 0.0
  %606 = vmatpush1.xpose.msra.mxu0 0.0
  %607 = vmatprep.subr.mxu0 0.0
  %608 = vmatpush1.xpose.msra.mxu0 0.0
  %609 = vmatprep.subr.mxu0 0.0
  %610 = vmatpush1.xpose.msra.mxu0 0.0
  %611 = vmatprep.subr.mxu0 0.0
  %612 = vmatpush1.xpose.msra.mxu0 0.0
  %613 = vmatprep.subr.mxu0 0.0
  %614 = vmatpush1.xpose.msra.mxu0 0.0
  %615 = vmatprep.subr.mxu0 0.0
  %616 = vmatpush1.xpose.msra.mxu0 0.0
  %617 = vmatprep.mubr.f32.mxu0 0.0
  %618 = vmatmul.mubr.f32.gmra.mrb[0].mxu0 %v503
  %v619 = vpop.f32.mrb[0].mxu0
  %v620 = vadd.f32 0.0, %v619
  %v621 = vpop.f32.mrb[0].mxu0
  %622 = vdwg.mxu0
  %v623 = vld [vmem:[#allocation2] sm:$0x1]
  %625 = vset.pattern.permute.xlu0 0
  %626 = vperm.xlu0 %625, %v623
  %v627 = vpop.permute.xlu0 %626
  %v629 = vlaneseq
  %v630 = vshrl.u32 %v629, 7
  %v631 = vsub.s32 0, %v630
  %v632 = vrot.slane %v627, %v631
  %v633 = vadd.f32 %v620, %v632
  %v634 = vxor.u32 %v633, 2147483648
  %v635 = vmul.f32 %v634, 1.442695
  %v636 = vpow.pop %v635
  %v637 = vadd.f32 %v636, 1.0
  %v638 = vrcp.pop %v637
  %v639 = vmul.f32 1.0, %v638
  %640 = vst [vmem:[%s7] sm:$0x1] %v639
  // Predicated region
  $region30: #{interaction_recommender_forward.1} parent=0 // pred_check
    _
  $region31: #{interaction_recommender_forward.1} parent=0 // pred_check_branch
    %642 = sbr.rel (0) target = $region33
  $region32: #{interaction_recommender_forward.1} parent=0 // pred_region
    _
  $region33: #{interaction_recommender_forward.1} parent=0 // pred_fallthru
    _
  // Predicated region
  $region34: #{interaction_recommender_forward.1} parent=0 // pred_check
    _
  $region35: #{interaction_recommender_forward.1} parent=0 // pred_check_branch
    %644 = sbr.rel (0) target = $region37
  $region36: #{interaction_recommender_forward.1} parent=0 // pred_region
    _
  $region37: #{interaction_recommender_forward.1} parent=0 // pred_fallthru
    _

</llo_original>
